<compile_context>
chip_gen: v6e
topology: v6e:2x2x1
jax: 0.10.0
libtpu: 0.0.40
codegen_flags: <defaults>
</compile_context>

<pallas_src>
import functools
import math

import jax
import jax.numpy as jnp
from jax.experimental import pallas as pl
from jax.experimental.pallas import tpu as pltpu


def mhsa_kernel(x_ref, wqkv_ref, wout_ref, bout_ref, cos_ref, sin_ref, mask_ref,
                o_ref, acc_ref, *, head_dim):
    # x_ref:    [1, T, C]      one batch element (re-used across the head axis)
    # wqkv_ref: [1, C, 3*D]    fused per-head projection weights (q/k columns de-interleaved)
    # wout_ref: [1, D, C]      this head's rows of the output projection
    # bout_ref: [1, C]         output-projection bias (f32)
    # cos/sin:  [T, D/2]       RoPE tables (f32)
    # mask_ref: [T, T]         additive causal mask (0 / -1e30, f32)
    # acc_ref:  [T, C] f32     output-projection accumulator across heads
    D = head_dim
    Dh = D // 2
    scale = 1.0 / math.sqrt(D)
    cdt = x_ref.dtype                       # MXU operand dtype (f32 or bf16)

    h = pl.program_id(1)

    @pl.when(h == 0)
    def _init():
        acc_ref[...] = jnp.zeros_like(acc_ref)

    x = x_ref[0]                            # [T, C]
    w_qkv = wqkv_ref[0]                     # [C, 3D]
    w_out = wout_ref[0]                     # [D, C]

    # Fused per-head Q/K/V projection (single MXU matmul, f32 accumulation).
    qkv = jnp.dot(x, w_qkv, preferred_element_type=jnp.float32)      # [T, 3D] f32
    q = qkv[:, :D]
    k = qkv[:, D:2 * D]
    v = qkv[:, 2 * D:]

    # Interleaved RoPE, expressed in rotate-half form on de-interleaved features.
    # Exact w.r.t. the PyTorch convention because the Wq/Wk columns were permuted
    # host-side and q·k is invariant under that consistent permutation.
    cos = cos_ref[...]                      # [T, D/2] f32
    sin = sin_ref[...]

    def rope(t):
        e, o = t[:, :Dh], t[:, Dh:]
        return jnp.concatenate([e * cos - o * sin, e * sin + o * cos], axis=-1)

    q = rope(q)
    k = rope(k)

    # Scores: contract head_dim of q and k directly (NT dot_general, no transpose).
    s = jax.lax.dot_general(q.astype(cdt), k.astype(cdt),
                            (((1,), (1,)), ((), ())),
                            preferred_element_type=jnp.float32)       # [T, T] f32
    s = s * scale + mask_ref[...]                                     # causal mask (f32)

    # Softmax statistics stay in f32 (bf16-safe).
    m = jnp.max(s, axis=-1, keepdims=True)
    p = jnp.exp(s - m)
    p = p / jnp.sum(p, axis=-1, keepdims=True)

    o_h = jnp.dot(p.astype(cdt), v.astype(cdt),
                  preferred_element_type=jnp.float32)                 # [T, D] f32

    # Fold this head straight into the output projection (no concat, no [T, C] attn buffer).
    acc_ref[...] += jnp.dot(o_h.astype(cdt), w_out,
                            preferred_element_type=jnp.float32)       # [T, C] f32

    @pl.when(h == pl.num_programs(1) - 1)
    def _finalize():
        y = acc_ref[...] + bout_ref[...]                              # bias broadcast over T
        o_ref[0] = y.astype(o_ref.dtype)


def mhsa_pallas(x, wqkv_heads, wout_heads, bout, cos_half, sin_half, mask_bias):
    B, T, C = x.shape
    H, _, D3 = wqkv_heads.shape
    D = D3 // 3
    kernel = functools.partial(mhsa_kernel, head_dim=D)
    return pl.pallas_call(
        kernel,
        out_shape=jax.ShapeDtypeStruct((B, T, C), x.dtype),
        grid_spec=pltpu.PrefetchScalarGridSpec(
            num_scalar_prefetch=0,
            grid=(B, H),                                   # heads = reduction axis (last)
            in_specs=[
                pl.BlockSpec((1, T, C), lambda b, h: (b, 0, 0)),       # x (cached across h)
                pl.BlockSpec((1, C, 3 * D), lambda b, h: (h, 0, 0)),   # per-head fused Wqkv
                pl.BlockSpec((1, D, C), lambda b, h: (h, 0, 0)),       # per-head Wout rows
                pl.BlockSpec((1, C), lambda b, h: (0, 0)),             # out-proj bias
                pl.BlockSpec((T, D // 2), lambda b, h: (0, 0)),        # RoPE cos
                pl.BlockSpec((T, D // 2), lambda b, h: (0, 0)),        # RoPE sin
                pl.BlockSpec((T, T), lambda b, h: (0, 0)),             # additive causal mask
            ],
            out_specs=pl.BlockSpec((1, T, C), lambda b, h: (b, 0, 0)),
            scratch_shapes=[pltpu.VMEM((T, C), jnp.float32)],          # out-proj accumulator
        ),
        compiler_params=pltpu.CompilerParams(
            dimension_semantics=("parallel", "arbitrary"),
            vmem_limit_bytes=32 * 1024 * 1024,
        ),
    )(x, wqkv_heads, wout_heads, bout, cos_half, sin_half, mask_bias)


# ---------------------------------------------------------------------------
# Pure-JAX reference (mirrors the PyTorch forward exactly: interleaved RoPE,
# causal SDPA with 1/sqrt(head_dim) scaling, output projection, dropout=0).
# ---------------------------------------------------------------------------
def ref_mhsa(x, wqkv, wout, bout, freqs_cis, heads):
    B, T, C = x.shape
    D = C // heads
    qkv = x @ wqkv
    q, k, v = qkv[..., :C], qkv[..., C:2 * C], qkv[..., 2 * C:]

    def split_heads(t):                                            # [B,T,C] -> [B,T,H,D]
        return t.reshape(B, T, heads, D)

    def apply_rope(t):                                             # t: [B,T,H,D]
        t2 = t.reshape(B, T, heads, D // 2, 2)
        cos = freqs_cis[:T, None, :, 0]                            # [T,1,D/2]
        sin = freqs_cis[:T, None, :, 1]
        x0, x1 = t2[..., 0], t2[..., 1]
        r0 = x0 * cos - x1 * sin
        r1 = x0 * sin + x1 * cos
        return jnp.stack([r0, r1], axis=-1).reshape(B, T, heads, D)

    q = apply_rope(split_heads(q)).transpose(0, 2, 1, 3)           # [B,H,T,D]
    k = apply_rope(split_heads(k)).transpose(0, 2, 1, 3)
    v = split_heads(v).transpose(0, 2, 1, 3)

    s = jnp.einsum('bhqd,bhkd->bhqk', q, k) / math.sqrt(D)
    mask = jnp.tril(jnp.ones((T, T), dtype=bool))
    s = jnp.where(mask, s, -jnp.inf)
    p = jax.nn.softmax(s, axis=-1)
    o = jnp.einsum('bhqk,bhkd->bhqd', p, v)
    o = o.transpose(0, 2, 1, 3).reshape(B, T, C)
    return o @ wout + bout


if __name__ == "__main__":
    # Small config consistent with the module: embed_dim=32, n_heads=4, head_dim=8.
    B, T, C, H = 2, 8, 32, 4
    D = C // H

    key = jax.random.PRNGKey(0)
    k1, k2, k3, k4 = jax.random.split(key, 4)

    x = jax.random.normal(k1, (B, T, C), dtype=jnp.float32)

    # Deterministic params (qkv_proj: Linear(C, 3C, bias=False); out_proj: Linear(C, C)).
    wqkv_torch = jax.random.normal(k2, (3 * C, C), dtype=jnp.float32) * (1.0 / math.sqrt(C))
    wout_torch = jax.random.normal(k3, (C, C), dtype=jnp.float32) * (1.0 / math.sqrt(C))
    bout = jax.random.normal(k4, (C,), dtype=jnp.float32) * 0.02

    wqkv = wqkv_torch.T                                            # [C, 3C]: x @ wqkv = qkv
    wout = wout_torch.T                                            # [C, C]

    # RoPE frequencies [T, D/2, 2] (cos, sin) — same construction as the PyTorch side.
    inv_freq = 1.0 / (10000.0 ** (jnp.arange(0, D, 2, dtype=jnp.float32) / D))
    ang = jnp.arange(T, dtype=jnp.float32)[:, None] * inv_freq[None, :]     # [T, D/2]
    freqs_cis = jnp.stack([jnp.cos(ang), jnp.sin(ang)], axis=-1)

    # ---- kernel-side parameter packing -------------------------------------
    # Per-head fused Wqkv blocks [H, C, 3D].  The q/k column order within each head is
    # de-interleaved (even RoPE lanes first, then odd), which turns the interleaved RoPE
    # into rotate-half form inside the kernel.  Attention scores are invariant under this
    # consistent permutation of q and k features, and v / the output are untouched.
    deint = jnp.concatenate([jnp.arange(0, D, 2), jnp.arange(1, D, 2)])     # [D]
    wqkv_heads = jnp.stack([
        jnp.concatenate([
            wqkv[:, h * D + deint],                     # Wq head h (de-interleaved)
            wqkv[:, C + h * D + deint],                 # Wk head h (de-interleaved)
            wqkv[:, 2 * C + h * D:2 * C + (h + 1) * D],  # Wv head h (natural order)
        ], axis=1)
        for h in range(H)
    ])                                                  # [H, C, 3D]
    wout_heads = wout.reshape(H, D, C)                  # per-head rows of the out projection

    cos_half = jnp.cos(ang)                             # [T, D/2]  (per-head, not tiled to C)
    sin_half = jnp.sin(ang)

    # Causal additive mask, built once on the host (hoisted out of the kernel), kept f32.
    row = jnp.arange(T)[:, None]
    col = jnp.arange(T)[None, :]
    mask_bias = jnp.where(col <= row, 0.0, -1e30).astype(jnp.float32)       # [T, T]

    bout2 = bout.reshape(1, C)

    ref = ref_mhsa(x, wqkv, wout, bout, freqs_cis, H)

    # f32 path: strict correctness vs the PyTorch-equivalent reference.
    out_f32 = mhsa_pallas(x, wqkv_heads, wout_heads, bout2, cos_half, sin_half, mask_bias)
    out_f32 = jax.block_until_ready(out_f32)
    assert out_f32.shape == (B, T, C)
    assert jnp.allclose(out_f32, ref, rtol=1e-4, atol=1e-4), "f32 mismatch vs reference"

    # bf16 path: MXU-native operands, f32 accumulation + f32 softmax (looser tolerance).
    out_bf16 = mhsa_pallas(x.astype(jnp.bfloat16),
                           wqkv_heads.astype(jnp.bfloat16),
                           wout_heads.astype(jnp.bfloat16),
                           bout2, cos_half, sin_half, mask_bias)
    out_bf16 = jax.block_until_ready(out_bf16)
    assert jnp.allclose(out_bf16.astype(jnp.float32), ref, rtol=1e-1, atol=1e-1), \
        "bf16 mismatch vs reference"

    print("KERNEL_OK")
</pallas_src>

<mosaic_0001>
module attributes {stable_mosaic.version = 11 : i64} {
  func.func @mhsa_kernel(%arg0: i32, %arg1: i32, %arg2: memref<1x8x32xf32, #tpu.memory_space<vmem>>, %arg3: memref<1x32x24xf32, #tpu.memory_space<vmem>>, %arg4: memref<1x8x32xf32, #tpu.memory_space<vmem>>, %arg5: memref<1x32xf32, #tpu.memory_space<vmem>>, %arg6: memref<8x4xf32, #tpu.memory_space<vmem>>, %arg7: memref<8x4xf32, #tpu.memory_space<vmem>>, %arg8: memref<8x8xf32, #tpu.memory_space<vmem>>, %arg9: memref<1x8x32xf32, #tpu.memory_space<vmem>>, %arg10: memref<8x32xf32, #tpu.memory_space<vmem>>) attributes {dimension_semantics = [#tpu.dimension_semantics<parallel>, #tpu.dimension_semantics<arbitrary>], iteration_bounds = array<i64: 2, 4>, scalar_prefetch = 0 : i64, scratch_operands = 1 : i64, tpu.core_type = #tpu.core_type<tc>, window_params = [{transform_indices = @transform_0, window_bounds = array<i64: 1, 8, 32>}, {transform_indices = @transform_1, window_bounds = array<i64: 1, 32, 24>}, {transform_indices = @transform_2, window_bounds = array<i64: 1, 8, 32>}, {pipeline_mode = #tpu.pipeline_mode<synchronous>, transform_indices = @transform_3, window_bounds = array<i64: 1, 32>}, {pipeline_mode = #tpu.pipeline_mode<synchronous>, transform_indices = @transform_4, window_bounds = array<i64: 8, 4>}, {pipeline_mode = #tpu.pipeline_mode<synchronous>, transform_indices = @transform_5, window_bounds = array<i64: 8, 4>}, {pipeline_mode = #tpu.pipeline_mode<synchronous>, transform_indices = @transform_6, window_bounds = array<i64: 8, 8>}, {transform_indices = @transform_7, window_bounds = array<i64: 1, 8, 32>}]} {
    %c0_i32 = arith.constant 0 : i32
    %0 = arith.cmpi eq, %arg1, %c0_i32 : i32
    %1 = arith.extui %0 : i1 to i32
    %c0_i32_0 = arith.constant 0 : i32
    %2 = arith.cmpi ne, %1, %c0_i32_0 : i32
    scf.if %2 {
      %cst_26 = arith.constant 0.000000e+00 : f32
      %55 = vector.broadcast %cst_26 : f32 to vector<8x32xf32>
      %c0_27 = arith.constant 0 : index
      %c0_28 = arith.constant 0 : index
      %56 = vector.load %arg10[%c0_27, %c0_28] : memref<8x32xf32, #tpu.memory_space<vmem>>, vector<8x32xf32>
      tpu.vector_store %arg10[%c0_27, %c0_28], %55 {strides = array<i32>} : memref<8x32xf32, #tpu.memory_space<vmem>>, vector<8x32xf32>,
    } else {
    }
    %c0 = arith.constant 0 : index
    %c0_1 = arith.constant 0 : index
    %c0_2 = arith.constant 0 : index
    %3 = vector.load %arg2[%c0, %c0_1, %c0_2] : memref<1x8x32xf32, #tpu.memory_space<vmem>>, vector<1x8x32xf32>
    %4 = vector.shape_cast %3 : vector<1x8x32xf32> to vector<8x32xf32>
    %c0_3 = arith.constant 0 : index
    %c0_4 = arith.constant 0 : index
    %c0_5 = arith.constant 0 : index
    %5 = vector.load %arg3[%c0_3, %c0_4, %c0_5] : memref<1x32x24xf32, #tpu.memory_space<vmem>>, vector<1x32x24xf32>
    %6 = vector.shape_cast %5 : vector<1x32x24xf32> to vector<32x24xf32>
    %c0_6 = arith.constant 0 : index
    %c0_7 = arith.constant 0 : index
    %c0_8 = arith.constant 0 : index
    %7 = vector.load %arg4[%c0_6, %c0_7, %c0_8] : memref<1x8x32xf32, #tpu.memory_space<vmem>>, vector<1x8x32xf32>
    %8 = vector.shape_cast %7 : vector<1x8x32xf32> to vector<8x32xf32>
    %cst = arith.constant dense<0.000000e+00> : vector<8x24xf32>
    %9 = tpu.matmul %4, %6, %cst {dimension_numbers = #tpu.dot_dimension_numbers<[1], [0], [0], [1], [0, 0, 1, 1], [], []>} : vector<8x32xf32>, vector<32x24xf32>, vector<8x24xf32> -> vector<8x24xf32>
    %10 = vector.extract_strided_slice %9 {offsets = [0, 0], sizes = [8, 8], strides = [1, 1]} : vector<8x24xf32> to vector<8x8xf32>
    %11 = vector.extract_strided_slice %9 {offsets = [0, 8], sizes = [8, 8], strides = [1, 1]} : vector<8x24xf32> to vector<8x8xf32>
    %12 = vector.extract_strided_slice %9 {offsets = [0, 16], sizes = [8, 8], strides = [1, 1]} : vector<8x24xf32> to vector<8x8xf32>
    %c0_9 = arith.constant 0 : index
    %c0_10 = arith.constant 0 : index
    %13 = vector.load %arg6[%c0_9, %c0_10] : memref<8x4xf32, #tpu.memory_space<vmem>>, vector<8x4xf32>
    %c0_11 = arith.constant 0 : index
    %c0_12 = arith.constant 0 : index
    %14 = vector.load %arg7[%c0_11, %c0_12] : memref<8x4xf32, #tpu.memory_space<vmem>>, vector<8x4xf32>
    %15 = vector.extract_strided_slice %10 {offsets = [0, 0], sizes = [8, 4], strides = [1, 1]} : vector<8x8xf32> to vector<8x4xf32>
    %16 = vector.extract_strided_slice %10 {offsets = [0, 4], sizes = [8, 4], strides = [1, 1]} : vector<8x8xf32> to vector<8x4xf32>
    %17 = arith.mulf %15, %13 : vector<8x4xf32>
    %18 = arith.mulf %16, %14 : vector<8x4xf32>
    %19 = arith.subf %17, %18 : vector<8x4xf32>
    %20 = arith.mulf %15, %14 : vector<8x4xf32>
    %21 = arith.mulf %16, %13 : vector<8x4xf32>
    %22 = arith.addf %20, %21 : vector<8x4xf32>
    %23 = tpu.concatenate %19, %22 in 1 : vector<8x4xf32>, vector<8x4xf32> -> vector<8x8xf32>
    %24 = vector.extract_strided_slice %11 {offsets = [0, 0], sizes = [8, 4], strides = [1, 1]} : vector<8x8xf32> to vector<8x4xf32>
    %25 = vector.extract_strided_slice %11 {offsets = [0, 4], sizes = [8, 4], strides = [1, 1]} : vector<8x8xf32> to vector<8x4xf32>
    %26 = arith.mulf %24, %13 : vector<8x4xf32>
    %27 = arith.mulf %25, %14 : vector<8x4xf32>
    %28 = arith.subf %26, %27 : vector<8x4xf32>
    %29 = arith.mulf %24, %14 : vector<8x4xf32>
    %30 = arith.mulf %25, %13 : vector<8x4xf32>
    %31 = arith.addf %29, %30 : vector<8x4xf32>
    %32 = tpu.concatenate %28, %31 in 1 : vector<8x4xf32>, vector<8x4xf32> -> vector<8x8xf32>
    %cst_13 = arith.constant dense<0.000000e+00> : vector<8x8xf32>
    %33 = tpu.matmul %23, %32, %cst_13 {dimension_numbers = #tpu.dot_dimension_numbers<[1], [1], [0], [0], [0, 0, 1, 0], [], []>} : vector<8x8xf32>, vector<8x8xf32>, vector<8x8xf32> -> vector<8x8xf32>
    %cst_14 = arith.constant 0.353553385 : f32
    %34 = vector.broadcast %cst_14 : f32 to vector<8x8xf32>
    %35 = arith.mulf %33, %34 : vector<8x8xf32>
    %c0_15 = arith.constant 0 : index
    %c0_16 = arith.constant 0 : index
    %36 = vector.load %arg8[%c0_15, %c0_16] : memref<8x8xf32, #tpu.memory_space<vmem>>, vector<8x8xf32>
    %37 = arith.addf %35, %36 : vector<8x8xf32>
    %cst_17 = arith.constant dense<0xFF800000> : vector<8xf32>
    %38 = vector.multi_reduction <maximumf>, %37, %cst_17 [1] : vector<8x8xf32> to vector<8xf32>
    %39 = vector.shape_cast %38 : vector<8xf32> to vector<8x1xf32>
    %40 = vector.broadcast %39 : vector<8x1xf32> to vector<8x8xf32>
    %41 = arith.subf %37, %40 : vector<8x8xf32>
    %42 = math.exp %41 : vector<8x8xf32>
    %cst_18 = arith.constant dense<0.000000e+00> : vector<8xf32>
    %43 = vector.multi_reduction <add>, %42, %cst_18 [1] : vector<8x8xf32> to vector<8xf32>
    %44 = vector.shape_cast %43 : vector<8xf32> to vector<8x1xf32>
    %45 = vector.broadcast %44 : vector<8x1xf32> to vector<8x8xf32>
    %46 = arith.divf %42, %45 : vector<8x8xf32>
    %cst_19 = arith.constant dense<0.000000e+00> : vector<8x8xf32>
    %47 = tpu.matmul %46, %12, %cst_19 {dimension_numbers = #tpu.dot_dimension_numbers<[1], [0], [0], [1], [0, 0, 1, 1], [], []>} : vector<8x8xf32>, vector<8x8xf32>, vector<8x8xf32> -> vector<8x8xf32>
    %c0_20 = arith.constant 0 : index
    %c0_21 = arith.constant 0 : index
    %48 = vector.load %arg10[%c0_20, %c0_21] : memref<8x32xf32, #tpu.memory_space<vmem>>, vector<8x32xf32>
    %cst_22 = arith.constant dense<0.000000e+00> : vector<8x32xf32>
    %49 = tpu.matmul %47, %8, %cst_22 {dimension_numbers = #tpu.dot_dimension_numbers<[1], [0], [0], [1], [0, 0, 1, 1], [], []>} : vector<8x8xf32>, vector<8x32xf32>, vector<8x32xf32> -> vector<8x32xf32>
    %50 = arith.addf %48, %49 : vector<8x32xf32>
    %c0_23 = arith.constant 0 : index
    %c0_24 = arith.constant 0 : index
    %51 = vector.load %arg10[%c0_23, %c0_24] : memref<8x32xf32, #tpu.memory_space<vmem>>, vector<8x32xf32>
    tpu.vector_store %arg10[%c0_23, %c0_24], %50 {strides = array<i32>} : memref<8x32xf32, #tpu.memory_space<vmem>>, vector<8x32xf32>,
    %c3_i32 = arith.constant 3 : i32
    %52 = arith.cmpi eq, %arg1, %c3_i32 : i32
    %53 = arith.extui %52 : i1 to i32
    %c0_i32_25 = arith.constant 0 : i32
    %54 = arith.cmpi ne, %53, %c0_i32_25 : i32
    scf.if %54 {
      %c0_26 = arith.constant 0 : index
      %c0_27 = arith.constant 0 : index
      %55 = vector.load %arg10[%c0_26, %c0_27] : memref<8x32xf32, #tpu.memory_space<vmem>>, vector<8x32xf32>
      %c0_28 = arith.constant 0 : index
      %c0_29 = arith.constant 0 : index
      %56 = vector.load %arg5[%c0_28, %c0_29] : memref<1x32xf32, #tpu.memory_space<vmem>>, vector<1x32xf32>
      %57 = vector.broadcast %56 : vector<1x32xf32> to vector<8x32xf32>
      %58 = arith.addf %55, %57 : vector<8x32xf32>
      %c0_30 = arith.constant 0 : index
      %c0_31 = arith.constant 0 : index
      %c0_32 = arith.constant 0 : index
      %59 = vector.load %arg9[%c0_30, %c0_31, %c0_32] : memref<1x8x32xf32, #tpu.memory_space<vmem>>, vector<1x8x32xf32>
      %60 = vector.shape_cast %59 : vector<1x8x32xf32> to vector<8x32xf32>
      %61 = vector.shape_cast %58 : vector<8x32xf32> to vector<1x8x32xf32>
      tpu.vector_store %arg9[%c0_30, %c0_31, %c0_32], %61 {strides = array<i32>} : memref<1x8x32xf32, #tpu.memory_space<vmem>>, vector<1x8x32xf32>,
    } else {
    }
    return
  }
  func.func @transform_0(%arg0: i32, %arg1: i32) -> (i32, i32, i32) {
    %c0_i32 = arith.constant 0 : i32
    %c0_i32_0 = arith.constant 0 : i32
    %c0_i32_1 = arith.constant 0 : i32
    return %arg0, %c0_i32, %c0_i32_0 : i32, i32, i32
  }
  func.func @transform_1(%arg0: i32, %arg1: i32) -> (i32, i32, i32) {
    %c0_i32 = arith.constant 0 : i32
    %c0_i32_0 = arith.constant 0 : i32
    %c0_i32_1 = arith.constant 0 : i32
    return %arg1, %c0_i32, %c0_i32_0 : i32, i32, i32
  }
  func.func @transform_2(%arg0: i32, %arg1: i32) -> (i32, i32, i32) {
    %c0_i32 = arith.constant 0 : i32
    %c0_i32_0 = arith.constant 0 : i32
    %c0_i32_1 = arith.constant 0 : i32
    return %arg1, %c0_i32, %c0_i32_0 : i32, i32, i32
  }
  func.func @transform_3(%arg0: i32, %arg1: i32) -> (i32, i32) {
    %c0_i32 = arith.constant 0 : i32
    %c0_i32_0 = arith.constant 0 : i32
    %c0_i32_1 = arith.constant 0 : i32
    return %c0_i32, %c0_i32_0 : i32, i32
  }
  func.func @transform_4(%arg0: i32, %arg1: i32) -> (i32, i32) {
    %c0_i32 = arith.constant 0 : i32
    %c0_i32_0 = arith.constant 0 : i32
    %c0_i32_1 = arith.constant 0 : i32
    return %c0_i32, %c0_i32_0 : i32, i32
  }
  func.func @transform_5(%arg0: i32, %arg1: i32) -> (i32, i32) {
    %c0_i32 = arith.constant 0 : i32
    %c0_i32_0 = arith.constant 0 : i32
    %c0_i32_1 = arith.constant 0 : i32
    return %c0_i32, %c0_i32_0 : i32, i32
  }
  func.func @transform_6(%arg0: i32, %arg1: i32) -> (i32, i32) {
    %c0_i32 = arith.constant 0 : i32
    %c0_i32_0 = arith.constant 0 : i32
    %c0_i32_1 = arith.constant 0 : i32
    return %c0_i32, %c0_i32_0 : i32, i32
  }
  func.func @transform_7(%arg0: i32, %arg1: i32) -> (i32, i32, i32) {
    %c0_i32 = arith.constant 0 : i32
    %c0_i32_0 = arith.constant 0 : i32
    %c0_i32_1 = arith.constant 0 : i32
    return %arg0, %c0_i32, %c0_i32_0 : i32, i32, i32
  }
}

</mosaic_0001>

<llo_original>
// kernel: tpu_custom_call.1
$region0: #{tpu_custom_call.1}
  #allocation0 [shape = 'u32[]', space=smem, size = 0x4, offset = 0x4, fixed_abs, tag = 'smem constant byte address 0x4 - core index']
  #allocation1 [shape = 'u32[144,128]{1,0:T(1,128)}', space=vmem, size = 0x12000, scoped, tag = 'internal scratch']
  #allocation2 [shape = 'f32[8,32]{1,0:T(8,128)}', space=vmem, size = 0x1000, scoped, tag = 'scratch operand']
  %s0 = inlined_call_operand.vmem [shape: f32[2,8,32], index: 0, kind: input, shape index: {}]
  %s1 = inlined_call_operand.vmem [shape: f32[4,32,24], index: 1, kind: input, shape index: {}]
  %s2 = inlined_call_operand.vmem [shape: f32[4,8,32], index: 2, kind: input, shape index: {}]
  %s3 = inlined_call_operand.vmem [shape: f32[1,32], index: 3, kind: input, shape index: {}]
  %s4 = inlined_call_operand.vmem [shape: f32[8,4], index: 4, kind: input, shape index: {}]
  %s5 = inlined_call_operand.vmem [shape: f32[8,4], index: 5, kind: input, shape index: {}]
  %s6 = inlined_call_operand.vmem [shape: f32[8,8], index: 6, kind: input, shape index: {}]
  %s7 = inlined_call_operand.hbm [shape: f32[2,8,32], index: 7, kind: output, shape index: {}]
  %s8 = sld [smem:[#allocation0]]
  $region69: #{tpu_custom_call.1} parent=0
    _
  %s10 = ssub.s32 1, %s8
  %s11 = scalar_select 0, %s10, %s8
  $region1: #{tpu_custom_call.1} parent=0
    #allocation3 [shape = 'u8[8192]{0}', space=vmem, size = 0x2000, scoped, tag = 'output window, operand 0']
    #allocation4 [shape = 's32[2]{0}', space=sflag, size = 0x8, scoped, tag = 'scoped memory for tpu_custom_call.1']
    %12 = vsyncpa [#allocation4], 0
    %s13 = scalar_lea.sflag [#allocation4], 1
    %14 = vsyncpa %s13, 0
    loop: start=0, step=1, limit=10
    $region2: #{tpu_custom_call.1} parent=1 // loop_pre_header
      _
    $region3: #{tpu_custom_call.1} parent=1 // loop_header
      %s16 = sphi 0, %s20
      %p17 = scmp.ge.s32.totalorder %s16, 10
      %s23 = sphi 0, %s35
      %s24 = sphi 0, %s31
      %s25 = sphi 0, %s23
      %s26 = sphi 0, %s24
      %s27 = sphi 0, %s25
      %s28 = sphi 0, %s26
      %s38 = sphi 0, %s40
      %s41 = sphi 0, %s38
      %s42 = sphi 0, %s41
      %s58 = sphi 0, %s42
      %s64 = sphi 0, %s66
      %s67 = sphi 0, %s64
      %s68 = sphi 0, %s67
      %s84 = sphi 0, %s68
      %s90 = sphi 0, %s92
      %s93 = sphi 0, %s90
      %s94 = sphi 0, %s93
      %s110 = sphi 0, %s94
      %s114 = sphi 0, %s114
      %s116 = sphi 0, %s114
      %s117 = sphi 0, %s116
      %s131 = sphi 0, %s117
      %s135 = sphi 0, %s135
      %s137 = sphi 0, %s135
      %s138 = sphi 0, %s137
      %s152 = sphi 0, %s138
      %s156 = sphi 0, %s156
      %s158 = sphi 0, %s156
      %s159 = sphi 0, %s158
      %s173 = sphi 0, %s159
      %s177 = sphi 0, %s177
      %s179 = sphi 0, %s177
      %s180 = sphi 0, %s179
      %s194 = sphi 0, %s180
      %s200 = sphi 0, %s202
      %s203 = sphi 0, %s200
      %s204 = sphi 0, %s203
      %s220 = sphi 0, %s204
    $region4: #{tpu_custom_call.1} parent=1 // loop_header_branch
      %19 = sbr.rel (%p17) target = $region8
    $region5: #{tpu_custom_call.1} parent=1 // loop_body
      %s21 = ssub.s32 %s16, 1
      %s22 = ssub.s32 %s16, 2
      %s29 = sadd.s32 1, %s24
      %p30 = scmp.ge.s32.totalorder %s29, 4
      %s31 = scalar_select %p30, 0, %s29
      %s32 = sadd.s32 1, %s23
      %s33 = scalar_select %p30, %s32, %s23
      %p34 = scmp.ge.s32.totalorder %s33, 2
      %s35 = scalar_select %p34, 0, %s33
      %s36 = ssub.s32 %s23, %s35
      %p37 = scmp.eq.s32.totalorder %s36, 0
      %s39 = sadd.s32 %s38, 1
      %s40 = scalar_select %p37, %s38, %s39
      %p43 = pneg %p37
      %p44 = scmp.eq.s32.totalorder %s16, 7
      %p45 = por %p43, %p44
      %p46 = scmp.ne.s32.totalorder %s38, %s41
      %p47 = scmp.eq.s32.totalorder %s16, 0
      %p48 = por %p46, %p47
      %p49 = scmp.ne.s32.totalorder %s38, %s41
      %p50 = scmp.eq.s32.totalorder %s21, 7
      %p51 = por %p49, %p50
      %p52 = scmp.ne.s32.totalorder %s41, %s42
      %p53 = scmp.eq.s32.totalorder %s21, 0
      %p54 = por %p52, %p53
      %p55 = scmp.ne.s32.totalorder %s41, %s42
      %p56 = scmp.eq.s32.totalorder %s22, 7
      %p57 = por %p55, %p56
      %p59 = scmp.ne.s32.totalorder %s42, %s58
      %p60 = scmp.eq.s32.totalorder %s22, 0
      %p61 = por %p59, %p60
      %s62 = ssub.s32 %s24, %s31
      %p63 = scmp.eq.s32.totalorder %s62, 0
      %s65 = sadd.s32 %s64, 1
      %s66 = scalar_select %p63, %s64, %s65
      %p69 = pneg %p63
      %p70 = scmp.eq.s32.totalorder %s16, 7
      %p71 = por %p69, %p70
      %p72 = scmp.ne.s32.totalorder %s64, %s67
      %p73 = scmp.eq.s32.totalorder %s16, 0
      %p74 = por %p72, %p73
      %p75 = scmp.ne.s32.totalorder %s64, %s67
      %p76 = scmp.eq.s32.totalorder %s21, 7
      %p77 = por %p75, %p76
      %p78 = scmp.ne.s32.totalorder %s67, %s68
      %p79 = scmp.eq.s32.totalorder %s21, 0
      %p80 = por %p78, %p79
      %p81 = scmp.ne.s32.totalorder %s67, %s68
      %p82 = scmp.eq.s32.totalorder %s22, 7
      %p83 = por %p81, %p82
      %p85 = scmp.ne.s32.totalorder %s68, %s84
      %p86 = scmp.eq.s32.totalorder %s22, 0
      %p87 = por %p85, %p86
      %s88 = ssub.s32 %s24, %s31
      %p89 = scmp.eq.s32.totalorder %s88, 0
      %s91 = sadd.s32 %s90, 1
      %s92 = scalar_select %p89, %s90, %s91
      %p95 = pneg %p89
      %p96 = scmp.eq.s32.totalorder %s16, 7
      %p97 = por %p95, %p96
      %p98 = scmp.ne.s32.totalorder %s90, %s93
      %p99 = scmp.eq.s32.totalorder %s16, 0
      %p100 = por %p98, %p99
      %p101 = scmp.ne.s32.totalorder %s90, %s93
      %p102 = scmp.eq.s32.totalorder %s21, 7
      %p103 = por %p101, %p102
      %p104 = scmp.ne.s32.totalorder %s93, %s94
      %p105 = scmp.eq.s32.totalorder %s21, 0
      %p106 = por %p104, %p105
      %p107 = scmp.ne.s32.totalorder %s93, %s94
      %p108 = scmp.eq.s32.totalorder %s22, 7
      %p109 = por %p107, %p108
      %p111 = scmp.ne.s32.totalorder %s94, %s110
      %p112 = scmp.eq.s32.totalorder %s22, 0
      %p113 = por %p111, %p112
      %s115 = sadd.s32 %s114, 1
      %p118 = scmp.eq.s32.totalorder %s16, 7
      %p119 = scmp.ne.s32.totalorder %s114, %s116
      %p120 = scmp.eq.s32.totalorder %s16, 0
      %p121 = por %p119, %p120
      %p122 = scmp.ne.s32.totalorder %s114, %s116
      %p123 = scmp.eq.s32.totalorder %s21, 7
      %p124 = por %p122, %p123
      %p125 = scmp.ne.s32.totalorder %s116, %s117
      %p126 = scmp.eq.s32.totalorder %s21, 0
      %p127 = por %p125, %p126
      %p128 = scmp.ne.s32.totalorder %s116, %s117
      %p129 = scmp.eq.s32.totalorder %s22, 7
      %p130 = por %p128, %p129
      %p132 = scmp.ne.s32.totalorder %s117, %s131
      %p133 = scmp.eq.s32.totalorder %s22, 0
      %p134 = por %p132, %p133
      %s136 = sadd.s32 %s135, 1
      %p139 = scmp.eq.s32.totalorder %s16, 7
      %p140 = scmp.ne.s32.totalorder %s135, %s137
      %p141 = scmp.eq.s32.totalorder %s16, 0
      %p142 = por %p140, %p141
      %p143 = scmp.ne.s32.totalorder %s135, %s137
      %p144 = scmp.eq.s32.totalorder %s21, 7
      %p145 = por %p143, %p144
      %p146 = scmp.ne.s32.totalorder %s137, %s138
      %p147 = scmp.eq.s32.totalorder %s21, 0
      %p148 = por %p146, %p147
      %p149 = scmp.ne.s32.totalorder %s137, %s138
      %p150 = scmp.eq.s32.totalorder %s22, 7
      %p151 = por %p149, %p150
      %p153 = scmp.ne.s32.totalorder %s138, %s152
      %p154 = scmp.eq.s32.totalorder %s22, 0
      %p155 = por %p153, %p154
      %s157 = sadd.s32 %s156, 1
      %p160 = scmp.eq.s32.totalorder %s16, 7
      %p161 = scmp.ne.s32.totalorder %s156, %s158
      %p162 = scmp.eq.s32.totalorder %s16, 0
      %p163 = por %p161, %p162
      %p164 = scmp.ne.s32.totalorder %s156, %s158
      %p165 = scmp.eq.s32.totalorder %s21, 7
      %p166 = por %p164, %p165
      %p167 = scmp.ne.s32.totalorder %s158, %s159
      %p168 = scmp.eq.s32.totalorder %s21, 0
      %p169 = por %p167, %p168
      %p170 = scmp.ne.s32.totalorder %s158, %s159
      %p171 = scmp.eq.s32.totalorder %s22, 7
      %p172 = por %p170, %p171
      %p174 = scmp.ne.s32.totalorder %s159, %s173
      %p175 = scmp.eq.s32.totalorder %s22, 0
      %p176 = por %p174, %p175
      %s178 = sadd.s32 %s177, 1
      %p181 = scmp.eq.s32.totalorder %s16, 7
      %p182 = scmp.ne.s32.totalorder %s177, %s179
      %p183 = scmp.eq.s32.totalorder %s16, 0
      %p184 = por %p182, %p183
      %p185 = scmp.ne.s32.totalorder %s177, %s179
      %p186 = scmp.eq.s32.totalorder %s21, 7
      %p187 = por %p185, %p186
      %p188 = scmp.ne.s32.totalorder %s179, %s180
      %p189 = scmp.eq.s32.totalorder %s21, 0
      %p190 = por %p188, %p189
      %p191 = scmp.ne.s32.totalorder %s179, %s180
      %p192 = scmp.eq.s32.totalorder %s22, 7
      %p193 = por %p191, %p192
      %p195 = scmp.ne.s32.totalorder %s180, %s194
      %p196 = scmp.eq.s32.totalorder %s22, 0
      %p197 = por %p195, %p196
      %s198 = ssub.s32 %s23, %s35
      %p199 = scmp.eq.s32.totalorder %s198, 0
      %s201 = sadd.s32 %s200, 1
      %s202 = scalar_select %p199, %s200, %s201
      %p205 = pneg %p199
      %p206 = scmp.eq.s32.totalorder %s16, 7
      %p207 = por %p205, %p206
      %p208 = scmp.ne.s32.totalorder %s200, %s203
      %p209 = scmp.eq.s32.totalorder %s16, 0
      %p210 = por %p208, %p209
      %p211 = scmp.ne.s32.totalorder %s200, %s203
      %p212 = scmp.eq.s32.totalorder %s21, 7
      %p213 = por %p211, %p212
      %p214 = scmp.ne.s32.totalorder %s203, %s204
      %p215 = scmp.eq.s32.totalorder %s21, 0
      %p216 = por %p214, %p215
      %p217 = scmp.ne.s32.totalorder %s203, %s204
      %p218 = scmp.eq.s32.totalorder %s22, 7
      %p219 = por %p217, %p218
      %p221 = scmp.ne.s32.totalorder %s204, %s220
      %p222 = scmp.eq.s32.totalorder %s22, 0
      %p223 = por %p221, %p222
      %p224 = scmp.le.s32.totalorder 1, %s16
      %p225 = scmp.lt.s32.totalorder %s16, 9
      %p226 = pnand %p224, %p225
      %p227 = pneg %p226
      // Predicated region
      $region9: #{tpu_custom_call.1} parent=5 // pred_check
        _
      $region10: #{tpu_custom_call.1} parent=5 // pred_check_branch
        %229 = sbr.rel (%p226) target = $region12
      $region11: #{tpu_custom_call.1} parent=5 // pred_region
        %s230 = ssub.s32 %s16, 1
        // Predicated region
        $region13: #{tpu_custom_call.1} parent=11 // pred_check
          %p231 = pneg %p127
        $region14: #{tpu_custom_call.1} parent=11 // pred_check_branch
          %233 = sbr.rel (%p231) target = $region16
        $region15: #{tpu_custom_call.1} parent=11 // pred_region
          _
        $region16: #{tpu_custom_call.1} parent=11 // pred_fallthru
          _
        // Predicated region
        $region17: #{tpu_custom_call.1} parent=11 // pred_check
          %p234 = pneg %p148
        $region18: #{tpu_custom_call.1} parent=11 // pred_check_branch
          %236 = sbr.rel (%p234) target = $region20
        $region19: #{tpu_custom_call.1} parent=11 // pred_region
          _
        $region20: #{tpu_custom_call.1} parent=11 // pred_fallthru
          _
        // Predicated region
        $region21: #{tpu_custom_call.1} parent=11 // pred_check
          %p237 = pneg %p169
        $region22: #{tpu_custom_call.1} parent=11 // pred_check_branch
          %239 = sbr.rel (%p237) target = $region24
        $region23: #{tpu_custom_call.1} parent=11 // pred_region
          _
        $region24: #{tpu_custom_call.1} parent=11 // pred_fallthru
          _
        // Predicated region
        $region25: #{tpu_custom_call.1} parent=11 // pred_check
          %p240 = pneg %p190
        $region26: #{tpu_custom_call.1} parent=11 // pred_check_branch
          %242 = sbr.rel (%p240) target = $region28
        $region27: #{tpu_custom_call.1} parent=11 // pred_region
          _
        $region28: #{tpu_custom_call.1} parent=11 // pred_fallthru
          _
      $region12: #{tpu_custom_call.1} parent=5 // pred_fallthru
        _
      %p243 = scmp.lt.s32.totalorder %s16, 8
      // Predicated region
      $region29: #{tpu_custom_call.1} parent=5 // pred_check
        %p244 = pneg %p243
      $region30: #{tpu_custom_call.1} parent=5 // pred_check_branch
        %246 = sbr.rel (%p244) target = $region32
      $region31: #{tpu_custom_call.1} parent=5 // pred_region
        // Predicated region
        $region33: #{tpu_custom_call.1} parent=31 // pred_check
          %p247 = pneg %p48
        $region34: #{tpu_custom_call.1} parent=31 // pred_check_branch
          %249 = sbr.rel (%p247) target = $region36
        $region35: #{tpu_custom_call.1} parent=31 // pred_region
          %p250 = scmp.lt.s32.totalorder %s23, 1
          %s251 = scalar_select %p250, %s23, 1
          %s252 = smul.addr %s251, 8
          %s253 = scalar_lea.vmem %s0, %s252
        $region36: #{tpu_custom_call.1} parent=31 // pred_fallthru
          _
        // Predicated region
        $region37: #{tpu_custom_call.1} parent=31 // pred_check
          %p254 = pneg %p74
        $region38: #{tpu_custom_call.1} parent=31 // pred_check_branch
          %256 = sbr.rel (%p254) target = $region40
        $region39: #{tpu_custom_call.1} parent=31 // pred_region
          %p257 = scmp.lt.s32.totalorder %s24, 3
          %s258 = scalar_select %p257, %s24, 3
          %s259 = smul.addr %s258, 4
          %s260 = smul.addr %s259, 8
          %s261 = scalar_lea.vmem %s1, %s260
        $region40: #{tpu_custom_call.1} parent=31 // pred_fallthru
          _
        // Predicated region
        $region41: #{tpu_custom_call.1} parent=31 // pred_check
          %p262 = pneg %p100
        $region42: #{tpu_custom_call.1} parent=31 // pred_check_branch
          %264 = sbr.rel (%p262) target = $region44
        $region43: #{tpu_custom_call.1} parent=31 // pred_region
          %p265 = scmp.lt.s32.totalorder %s24, 3
          %s266 = scalar_select %p265, %s24, 3
          %s267 = smul.addr %s266, 8
          %s268 = scalar_lea.vmem %s2, %s267
        $region44: #{tpu_custom_call.1} parent=31 // pred_fallthru
          _
      $region32: #{tpu_custom_call.1} parent=5 // pred_fallthru
        _
      %p269 = scmp.le.s32.totalorder 1, %s16
      %p270 = scmp.lt.s32.totalorder %s16, 9
      %p271 = pnand %p269, %p270
      %p272 = pneg %p271
      // Predicated region
      $region45: #{tpu_custom_call.1} parent=5 // pred_check
        _
      $region46: #{tpu_custom_call.1} parent=5 // pred_check_branch
        %274 = sbr.rel (%p271) target = $region48
      $region47: #{tpu_custom_call.1} parent=5 // pred_region
        %s275 = ssub.s32 %s16, 1
        %p276 = scmp.lt.s32.totalorder %s25, 1
        %s277 = scalar_select %p276, %s25, 1
        %s278 = smul.addr %s277, 8
        %s279 = scalar_lea.vmem %s0, %s278
        %p280 = pneg %p54
        %p281 = pneg %p51
        %p282 = scmp.lt.s32.totalorder %s26, 3
        %s283 = scalar_select %p282, %s26, 3
        %s284 = smul.addr %s283, 4
        %s285 = smul.addr %s284, 8
        %s286 = scalar_lea.vmem %s1, %s285
        %p287 = pneg %p80
        %p288 = pneg %p77
        %p289 = scmp.lt.s32.totalorder %s26, 3
        %s290 = scalar_select %p289, %s26, 3
        %s291 = smul.addr %s290, 8
        %s292 = scalar_lea.vmem %s2, %s291
        %p293 = pneg %p106
        %p294 = pneg %p103
        %p295 = pneg %p127
        %p296 = pneg %p124
        %p297 = pneg %p148
        %p298 = pneg %p145
        %p299 = pneg %p169
        %p300 = pneg %p166
        %p301 = pneg %p190
        %p302 = pneg %p187
        %p303 = pneg %p216
        %p304 = pneg %p213
        %s305 = sand.u32 %s203, 1
        %s306 = scalar_lea.sflag [#allocation4], %s305
        %s307 = sand.u32 %s203, 1
        %s308 = smul.addr %s307, 8
        %s309 = scalar_lea.vmem [#allocation3], %s308
        %p310 = scmp.lt.s32.totalorder %s25, 1
        %s311 = scalar_select %p310, %s25, 1
        %s312 = smul.addr %s311, 8
        %s313 = scalar_lea.vmem %s0, %s312
        %p314 = scmp.lt.s32.totalorder %s26, 3
        %s315 = scalar_select %p314, %s26, 3
        %s316 = smul.addr %s315, 4
        %s317 = smul.addr %s316, 8
        %s318 = scalar_lea.vmem %s1, %s317
        %p319 = scmp.lt.s32.totalorder %s26, 3
        %s320 = scalar_select %p319, %s26, 3
        %s321 = smul.addr %s320, 8
        %s322 = scalar_lea.vmem %s2, %s321
        %p323 = scmp.eq.s32.totalorder %s26, 0
        // Predicated region
        $region49: #{tpu_custom_call.1} parent=47 // pred_check
          %p324 = pneg %p323
        $region50: #{tpu_custom_call.1} parent=47 // pred_check_branch
          %326 = sbr.rel (%p324) target = $region52
        $region51: #{tpu_custom_call.1} parent=47 // pred_region
          %vm327 = vcmask 261120
          %328 = vst.msk [vmem:[#allocation2] sm:$0xff] %vm327, 0.0
        $region52: #{tpu_custom_call.1} parent=47 // pred_fallthru
          _
        %v329 = vld [vmem:[%s313] sm:$0xff]
        %v330 = vld [vmem:[%s318] sm:$0xff]
        %v331 = vld [vmem:[%s318 + $0x8] sm:$0xff]
        %v332 = vld [vmem:[%s318 + $0x10] sm:$0xff]
        %v333 = vld [vmem:[%s318 + $0x18] sm:$0xff]
        %v334 = vld [vmem:[%s322] sm:$0xff]
        %vm335 = vcmask 261120
        %v337 = vsel %vm335, %v329, 0
        %339 = vmatprep.subr.mxu0 0.0
        %340 = vmatpush1.msra.mxu0 0.0
        %341 = vmatprep.subr.mxu0 0.0
        %342 = vmatpush1.msra.mxu0 0.0
        %343 = vmatprep.subr.mxu0 0.0
        %344 = vmatpush1.msra.mxu0 0.0
        %345 = vmatprep.subr.mxu0 0.0
        %346 = vmatpush1.msra.mxu0 0.0
        %347 = vmatprep.subr.mxu0 0.0
        %348 = vmatpush1.msra.mxu0 0.0
        %349 = vmatprep.subr.mxu0 0.0
        %350 = vmatpush1.msra.mxu0 0.0
        %351 = vmatprep.subr.mxu0 0.0
        %352 = vmatpush1.msra.mxu0 0.0
        %353 = vmatprep.subr.mxu0 0.0
        %354 = vmatpush1.msra.mxu0 0.0
        %355 = vmatprep.subr.mxu0 0.0
        %356 = vmatpush1.msra.mxu0 0.0
        %357 = vmatprep.subr.mxu0 0.0
        %358 = vmatpush1.msra.mxu0 0.0
        %359 = vmatprep.subr.mxu0 0.0
        %360 = vmatpush1.msra.mxu0 0.0
        %361 = vmatprep.subr.mxu0 0.0
        %362 = vmatpush1.msra.mxu0 0.0
        %363 = vmatprep.subr.mxu0 0.0
        %364 = vmatpush1.msra.mxu0 %v333
        %365 = vmatprep.subr.mxu0 0.0
        %366 = vmatpush1.msra.mxu0 %v332
        %367 = vmatprep.subr.mxu0 0.0
        %368 = vmatpush1.msra.mxu0 %v331
        %369 = vmatprep.subr.mxu0 0.0
        %370 = vmatpush1.msra.mxu0 %v330
        %371 = vmatprep.subr.mxu0 0.0
        %372 = vmatpush2.msra.mxu0 0.0
        %373 = vmatprep.subr.mxu0 0.0
        %374 = vmatpush2.msra.mxu0 0.0
        %375 = vmatprep.subr.mxu0 0.0
        %376 = vmatpush2.msra.mxu0 0.0
        %377 = vmatprep.subr.mxu0 0.0
        %378 = vmatpush2.msra.mxu0 0.0
        %379 = vmatprep.subr.mxu0 0.0
        %380 = vmatpush2.msra.mxu0 0.0
        %381 = vmatprep.subr.mxu0 0.0
        %382 = vmatpush2.msra.mxu0 0.0
        %383 = vmatprep.subr.mxu0 0.0
        %384 = vmatpush2.msra.mxu0 0.0
        %385 = vmatprep.subr.mxu0 0.0
        %386 = vmatpush2.msra.mxu0 0.0
        %387 = vmatprep.subr.mxu0 0.0
        %388 = vmatpush2.msra.mxu0 0.0
        %389 = vmatprep.subr.mxu0 0.0
        %390 = vmatpush2.msra.mxu0 0.0
        %391 = vmatprep.subr.mxu0 0.0
        %392 = vmatpush2.msra.mxu0 0.0
        %393 = vmatprep.subr.mxu0 0.0
        %394 = vmatpush2.msra.mxu0 0.0
        %395 = vmatprep.subr.mxu0 0.0
        %396 = vmatpush2.msra.mxu0 0.0
        %397 = vmatprep.subr.mxu0 0.0
        %398 = vmatpush2.msra.mxu0 0.0
        %399 = vmatprep.subr.mxu0 0.0
        %400 = vmatpush2.msra.mxu0 0.0
        %401 = vmatprep.subr.mxu0 0.0
        %402 = vmatpush2.msra.mxu0 0.0
        %403 = vmatprep.mubr.f32.mxu0 0.0
        %404 = vmatmul.mubr.f32.gmra.mxu0 %v337
        %v405 = vpop.f32.mrf.mxu0
        %v406 = vadd.f32 0.0, %v405
        %v407 = vpop.f32.mrf.mxu0
        %408 = vdwg.mxu0
        %v409 = vld [vmem:[%s4] sm:$0xff]
        %v410 = vld [vmem:[%s5] sm:$0xff]
        %v411 = vmul.f32 %v406, %v409
        %413 = vrot.lane.b32.xlu0 %v410, 4
        %v414 = vpop.permute.xlu0 %413
        %v416 = vmul.f32 %v406, %v414
        %418 = vrot.lane.b32.xlu0 %v416, 124
        %v419 = vpop.permute.xlu0 %418
        %v421 = vsub.f32 %v411, %v419
        %v422 = vmul.f32 %v406, %v410
        %424 = vrot.lane.b32.xlu0 %v409, 4
        %v425 = vpop.permute.xlu0 %424
        %v427 = vmul.f32 %v406, %v425
        %429 = vrot.lane.b32.xlu0 %v427, 124
        %v430 = vpop.permute.xlu0 %429
        %v432 = vadd.f32 %v422, %v430
        %434 = vrot.lane.b32.xlu0 %v432, 4
        %v435 = vpop.permute.xlu0 %434
        %vm437 = vcmask 31744
        %v438 = vsel %vm437, %v421, %v435
        %439 = vrot.lane.b32.xlu0 %v409, 8
        %v440 = vpop.permute.xlu0 %439
        %v442 = vmul.f32 %v406, %v440
        %443 = vrot.lane.b32.xlu0 %v410, 12
        %v444 = vpop.permute.xlu0 %443
        %v446 = vmul.f32 %v406, %v444
        %448 = vrot.lane.b32.xlu0 %v446, 124
        %v449 = vpop.permute.xlu0 %448
        %v451 = vsub.f32 %v442, %v449
        %452 = vrot.lane.b32.xlu0 %v410, 8
        %v453 = vpop.permute.xlu0 %452
        %v455 = vmul.f32 %v406, %v453
        %456 = vrot.lane.b32.xlu0 %v409, 12
        %v457 = vpop.permute.xlu0 %456
        %v459 = vmul.f32 %v406, %v457
        %461 = vrot.lane.b32.xlu0 %v459, 124
        %v462 = vpop.permute.xlu0 %461
        %v464 = vadd.f32 %v455, %v462
        %466 = vrot.lane.b32.xlu0 %v451, 120
        %v467 = vpop.permute.xlu0 %466
        %470 = vrot.lane.b32.xlu0 %v464, 124
        %v471 = vpop.permute.xlu0 %470
        %v473 = vsel %vm437, %v467, %v471
        %vm474 = vcmask 64512
        %v476 = vsel %vm474, %v438, 0
        %v479 = vsel %vm474, %v473, 0
        %481 = vmatprep.subr.mxu0 0.0
        %482 = vmatpush1.xpose.msra.mxu0 0.0
        %483 = vmatprep.subr.mxu0 0.0
        %484 = vmatpush1.xpose.msra.mxu0 0.0
        %485 = vmatprep.subr.mxu0 0.0
        %486 = vmatpush1.xpose.msra.mxu0 0.0
        %487 = vmatprep.subr.mxu0 0.0
        %488 = vmatpush1.xpose.msra.mxu0 0.0
        %489 = vmatprep.subr.mxu0 0.0
        %490 = vmatpush1.xpose.msra.mxu0 0.0
        %491 = vmatprep.subr.mxu0 0.0
        %492 = vmatpush1.xpose.msra.mxu0 0.0
        %493 = vmatprep.subr.mxu0 0.0
        %494 = vmatpush1.xpose.msra.mxu0 0.0
        %495 = vmatprep.subr.mxu0 0.0
        %496 = vmatpush1.xpose.msra.mxu0 0.0
        %497 = vmatprep.subr.mxu0 0.0
        %498 = vmatpush1.xpose.msra.mxu0 0.0
        %499 = vmatprep.subr.mxu0 0.0
        %500 = vmatpush1.xpose.msra.mxu0 0.0
        %501 = vmatprep.subr.mxu0 0.0
        %502 = vmatpush1.xpose.msra.mxu0 0.0
        %503 = vmatprep.subr.mxu0 0.0
        %504 = vmatpush1.xpose.msra.mxu0 0.0
        %505 = vmatprep.subr.mxu0 0.0
        %506 = vmatpush1.xpose.msra.mxu0 0.0
        %507 = vmatprep.subr.mxu0 0.0
        %508 = vmatpush1.xpose.msra.mxu0 0.0
        %509 = vmatprep.subr.mxu0 0.0
        %510 = vmatpush1.xpose.msra.mxu0 0.0
        %511 = vmatprep.subr.mxu0 0.0
        %512 = vmatpush1.xpose.msra.mxu0 %v479
        %513 = vmatprep.subr.mxu0 0.0
        %514 = vmatpush2.xpose.msra.mxu0 0.0
        %515 = vmatprep.subr.mxu0 0.0
        %516 = vmatpush2.xpose.msra.mxu0 0.0
        %517 = vmatprep.subr.mxu0 0.0
        %518 = vmatpush2.xpose.msra.mxu0 0.0
        %519 = vmatprep.subr.mxu0 0.0
        %520 = vmatpush2.xpose.msra.mxu0 0.0
        %521 = vmatprep.subr.mxu0 0.0
        %522 = vmatpush2.xpose.msra.mxu0 0.0
        %523 = vmatprep.subr.mxu0 0.0
        %524 = vmatpush2.xpose.msra.mxu0 0.0
        %525 = vmatprep.subr.mxu0 0.0
        %526 = vmatpush2.xpose.msra.mxu0 0.0
        %527 = vmatprep.subr.mxu0 0.0
        %528 = vmatpush2.xpose.msra.mxu0 0.0
        %529 = vmatprep.subr.mxu0 0.0
        %530 = vmatpush2.xpose.msra.mxu0 0.0
        %531 = vmatprep.subr.mxu0 0.0
        %532 = vmatpush2.xpose.msra.mxu0 0.0
        %533 = vmatprep.subr.mxu0 0.0
        %534 = vmatpush2.xpose.msra.mxu0 0.0
        %535 = vmatprep.subr.mxu0 0.0
        %536 = vmatpush2.xpose.msra.mxu0 0.0
        %537 = vmatprep.subr.mxu0 0.0
        %538 = vmatpush2.xpose.msra.mxu0 0.0
        %539 = vmatprep.subr.mxu0 0.0
        %540 = vmatpush2.xpose.msra.mxu0 0.0
        %541 = vmatprep.subr.mxu0 0.0
        %542 = vmatpush2.xpose.msra.mxu0 0.0
        %543 = vmatprep.subr.mxu0 0.0
        %544 = vmatpush2.xpose.msra.mxu0 0.0
        %545 = vmatprep.mubr.f32.mxu0 0.0
        %546 = vmatmul.mubr.f32.gmra.mxu0 %v476
        %v547 = vpop.f32.mrf.mxu0
        %v548 = vadd.f32 0.0, %v547
        %v549 = vpop.f32.mrf.mxu0
        %550 = vdwg.mxu0
        %v551 = vmul.f32 %v548, 0.35355338
        %v552 = vld [vmem:[%s6] sm:$0xff]
        %v553 = vadd.f32 %v551, %v552
        %v554 = vsel %vm474, %v553, -inf
        %555 = vmax.xlane.f32.xlu0 %v554
        %v556 = vpop.xlane.xlu0 %555
        %v557 = vsub.f32 %v553, %v556
        %v558 = vmul.f32 %v557, 1.442695
        %v559 = vpow.pop %v558
        %v560 = vsel %vm474, %v559, 0.0
        %561 = vadd.xlane.f32.xlu0 %v560
        %v562 = vpop.xlane.xlu0 %561
        %v563 = vrcp.pop %v562
        %v564 = vmul.f32 %v559, %v563
        %566 = vrot.lane.b32.xlu0 %v406, 112
        %v567 = vpop.permute.xlu0 %566
        %v570 = vsel %vm474, %v564, 0
        %572 = vmatprep.subr.mxu0 0.0
        %573 = vmatpush1.msra.mxu0 0.0
        %574 = vmatprep.subr.mxu0 0.0
        %575 = vmatpush1.msra.mxu0 0.0
        %576 = vmatprep.subr.mxu0 0.0
        %577 = vmatpush1.msra.mxu0 0.0
        %578 = vmatprep.subr.mxu0 0.0
        %579 = vmatpush1.msra.mxu0 0.0
        %580 = vmatprep.subr.mxu0 0.0
        %581 = vmatpush1.msra.mxu0 0.0
        %582 = vmatprep.subr.mxu0 0.0
        %583 = vmatpush1.msra.mxu0 0.0
        %584 = vmatprep.subr.mxu0 0.0
        %585 = vmatpush1.msra.mxu0 0.0
        %586 = vmatprep.subr.mxu0 0.0
        %587 = vmatpush1.msra.mxu0 0.0
        %588 = vmatprep.subr.mxu0 0.0
        %589 = vmatpush1.msra.mxu0 0.0
        %590 = vmatprep.subr.mxu0 0.0
        %591 = vmatpush1.msra.mxu0 0.0
        %592 = vmatprep.subr.mxu0 0.0
        %593 = vmatpush1.msra.mxu0 0.0
        %594 = vmatprep.subr.mxu0 0.0
        %595 = vmatpush1.msra.mxu0 0.0
        %596 = vmatprep.subr.mxu0 0.0
        %597 = vmatpush1.msra.mxu0 0.0
        %598 = vmatprep.subr.mxu0 0.0
        %599 = vmatpush1.msra.mxu0 0.0
        %600 = vmatprep.subr.mxu0 0.0
        %601 = vmatpush1.msra.mxu0 0.0
        %602 = vmatprep.subr.mxu0 0.0
        %603 = vmatpush1.msra.mxu0 %v567
        %604 = vmatprep.subr.mxu0 0.0
        %605 = vmatpush2.msra.mxu0 0.0
        %606 = vmatprep.subr.mxu0 0.0
        %607 = vmatpush2.msra.mxu0 0.0
        %608 = vmatprep.subr.mxu0 0.0
        %609 = vmatpush2.msra.mxu0 0.0
        %610 = vmatprep.subr.mxu0 0.0
        %611 = vmatpush2.msra.mxu0 0.0
        %612 = vmatprep.subr.mxu0 0.0
        %613 = vmatpush2.msra.mxu0 0.0
        %614 = vmatprep.subr.mxu0 0.0
        %615 = vmatpush2.msra.mxu0 0.0
        %616 = vmatprep.subr.mxu0 0.0
        %617 = vmatpush2.msra.mxu0 0.0
        %618 = vmatprep.subr.mxu0 0.0
        %619 = vmatpush2.msra.mxu0 0.0
        %620 = vmatprep.subr.mxu0 0.0
        %621 = vmatpush2.msra.mxu0 0.0
        %622 = vmatprep.subr.mxu0 0.0
        %623 = vmatpush2.msra.mxu0 0.0
        %624 = vmatprep.subr.mxu0 0.0
        %625 = vmatpush2.msra.mxu0 0.0
        %626 = vmatprep.subr.mxu0 0.0
        %627 = vmatpush2.msra.mxu0 0.0
        %628 = vmatprep.subr.mxu0 0.0
        %629 = vmatpush2.msra.mxu0 0.0
        %630 = vmatprep.subr.mxu0 0.0
        %631 = vmatpush2.msra.mxu0 0.0
        %632 = vmatprep.subr.mxu0 0.0
        %633 = vmatpush2.msra.mxu0 0.0
        %634 = vmatprep.subr.mxu0 0.0
        %635 = vmatpush2.msra.mxu0 0.0
        %636 = vmatprep.mubr.f32.mxu0 0.0
        %637 = vmatmul.mubr.f32.gmra.mxu0 %v570
        %v638 = vpop.f32.mrf.mxu0
        %v639 = vadd.f32 0.0, %v638
        %v640 = vpop.f32.mrf.mxu0
        %641 = vdwg.mxu0
        %v642 = vld [vmem:[#allocation2] sm:$0xff]
        %v644 = vsel %vm474, %v639, 0
        %646 = vmatprep.subr.mxu0 0.0
        %647 = vmatpush1.msra.mxu0 0.0
        %648 = vmatprep.subr.mxu0 0.0
        %649 = vmatpush1.msra.mxu0 0.0
        %650 = vmatprep.subr.mxu0 0.0
        %651 = vmatpush1.msra.mxu0 0.0
        %652 = vmatprep.subr.mxu0 0.0
        %653 = vmatpush1.msra.mxu0 0.0
        %654 = vmatprep.subr.mxu0 0.0
        %655 = vmatpush1.msra.mxu0 0.0
        %656 = vmatprep.subr.mxu0 0.0
        %657 = vmatpush1.msra.mxu0 0.0
        %658 = vmatprep.subr.mxu0 0.0
        %659 = vmatpush1.msra.mxu0 0.0
        %660 = vmatprep.subr.mxu0 0.0
        %661 = vmatpush1.msra.mxu0 0.0
        %662 = vmatprep.subr.mxu0 0.0
        %663 = vmatpush1.msra.mxu0 0.0
        %664 = vmatprep.subr.mxu0 0.0
        %665 = vmatpush1.msra.mxu0 0.0
        %666 = vmatprep.subr.mxu0 0.0
        %667 = vmatpush1.msra.mxu0 0.0
        %668 = vmatprep.subr.mxu0 0.0
        %669 = vmatpush1.msra.mxu0 0.0
        %670 = vmatprep.subr.mxu0 0.0
        %671 = vmatpush1.msra.mxu0 0.0
        %672 = vmatprep.subr.mxu0 0.0
        %673 = vmatpush1.msra.mxu0 0.0
        %674 = vmatprep.subr.mxu0 0.0
        %675 = vmatpush1.msra.mxu0 0.0
        %676 = vmatprep.subr.mxu0 0.0
        %677 = vmatpush1.msra.mxu0 %v334
        %678 = vmatprep.subr.mxu0 0.0
        %679 = vmatpush2.msra.mxu0 0.0
        %680 = vmatprep.subr.mxu0 0.0
        %681 = vmatpush2.msra.mxu0 0.0
        %682 = vmatprep.subr.mxu0 0.0
        %683 = vmatpush2.msra.mxu0 0.0
        %684 = vmatprep.subr.mxu0 0.0
        %685 = vmatpush2.msra.mxu0 0.0
        %686 = vmatprep.subr.mxu0 0.0
        %687 = vmatpush2.msra.mxu0 0.0
        %688 = vmatprep.subr.mxu0 0.0
        %689 = vmatpush2.msra.mxu0 0.0
        %690 = vmatprep.subr.mxu0 0.0
        %691 = vmatpush2.msra.mxu0 0.0
        %692 = vmatprep.subr.mxu0 0.0
        %693 = vmatpush2.msra.mxu0 0.0
        %694 = vmatprep.subr.mxu0 0.0
        %695 = vmatpush2.msra.mxu0 0.0
        %696 = vmatprep.subr.mxu0 0.0
        %697 = vmatpush2.msra.mxu0 0.0
        %698 = vmatprep.subr.mxu0 0.0
        %699 = vmatpush2.msra.mxu0 0.0
        %700 = vmatprep.subr.mxu0 0.0
        %701 = vmatpush2.msra.mxu0 0.0
        %702 = vmatprep.subr.mxu0 0.0
        %703 = vmatpush2.msra.mxu0 0.0
        %704 = vmatprep.subr.mxu0 0.0
        %705 = vmatpush2.msra.mxu0 0.0
        %706 = vmatprep.subr.mxu0 0.0
        %707 = vmatpush2.msra.mxu0 0.0
        %708 = vmatprep.subr.mxu0 0.0
        %709 = vmatpush2.msra.mxu0 0.0
        %710 = vmatprep.mubr.f32.mxu0 0.0
        %711 = vmatmul.mubr.f32.gmra.mxu0 %v644
        %v712 = vpop.f32.mrf.mxu0
        %v713 = vadd.f32 0.0, %v712
        %v714 = vpop.f32.mrf.mxu0
        %715 = vdwg.mxu0
        %v716 = vadd.f32 %v642, %v713
        %717 = vst.msk [vmem:[#allocation2] sm:$0xff] %vm335, %v716
        %p718 = scmp.eq.s32.totalorder %s26, 3
        // Predicated region
        $region53: #{tpu_custom_call.1} parent=47 // pred_check
          %p719 = pneg %p718
        $region54: #{tpu_custom_call.1} parent=47 // pred_check_branch
          %721 = sbr.rel (%p719) target = $region56
        $region55: #{tpu_custom_call.1} parent=47 // pred_region
          %v722 = vld [vmem:[#allocation2] sm:$0xff]
          %v723 = vld [vmem:[%s3] sm:$0x1]
          %v725 = vlaneseq
          %v726 = vshrl.u32 %v725, 7
          %v727 = vsub.s32 0, %v726
          %v728 = vrot.slane %v723, %v727
          %v730 = vadd.f32 %v722, %v728
          %731 = vst.msk [vmem:[%s309] sm:$0xff] %vm335, %v730
        $region56: #{tpu_custom_call.1} parent=47 // pred_fallthru
          _
        %s732 = sand.u32 %s203, 1
        %s733 = scalar_lea.sflag [#allocation4], %s732
        %s734 = sand.u32 %s203, 1
        %s735 = smul.addr %s734, 8
        %s736 = scalar_lea.vmem [#allocation3], %s735
        // Predicated region
        $region57: #{tpu_custom_call.1} parent=47 // pred_check
          %p737 = pneg %p213
        $region58: #{tpu_custom_call.1} parent=47 // pred_check_branch
          %739 = sbr.rel (%p737) target = $region60
        $region59: #{tpu_custom_call.1} parent=47 // pred_region
          %s741 = ssub.s32 128, 128
          %742 = vsyncadd %s733, %s741
          %s743 = smul.addr %s25, 128
          %s744 = scalar_lea.hbm %s7, %s743
          %s746 = sshll.u32 %s736, 4
          %s747 = int_to_ptr.vmem [resolvable:$true] %s746
          %749 = dma.vmem_to_hbm [thread:$0]  %s747, 128, %s744, %s733
        $region60: #{tpu_custom_call.1} parent=47 // pred_fallthru
          _
      $region48: #{tpu_custom_call.1} parent=5 // pred_fallthru
        _
      %p750 = scmp.le.s32.totalorder 2, %s16
      // Predicated region
      $region61: #{tpu_custom_call.1} parent=5 // pred_check
        %p751 = pneg %p750
      $region62: #{tpu_custom_call.1} parent=5 // pred_check_branch
        %753 = sbr.rel (%p751) target = $region64
      $region63: #{tpu_custom_call.1} parent=5 // pred_region
        %s754 = ssub.s32 %s16, 2
        // Predicated region
        $region65: #{tpu_custom_call.1} parent=63 // pred_check
          %p755 = pneg %p219
        $region66: #{tpu_custom_call.1} parent=63 // pred_check_branch
          %757 = sbr.rel (%p755) target = $region68
        $region67: #{tpu_custom_call.1} parent=63 // pred_region
          %s758 = sand.u32 %s204, 1
          %s759 = scalar_lea.sflag [#allocation4], %s758
          %s760 = sand.u32 %s204, 1
          %s761 = smul.addr %s760, 8
          %s762 = scalar_lea.vmem [#allocation3], %s761
          %763 = dma.done %s759, 128
        $region68: #{tpu_custom_call.1} parent=63 // pred_fallthru
          _
      $region64: #{tpu_custom_call.1} parent=5 // pred_fallthru
        _
    $region6: #{tpu_custom_call.1} parent=1 // loop_footer
      %s20 = sadd.s32 1, %s16
    $region7: #{tpu_custom_call.1} parent=1 // loop_footer_branch
      %15 = sbr.rel target = $region3
    $region8: #{tpu_custom_call.1} parent=1 // loop_exit
      _
    %764 = vsyncpa [#allocation4], 1
    %s765 = scalar_lea.sflag [#allocation4], 1
    %766 = vsyncpa %s765, 1

</llo_original>
